<compile_context>
chip_gen: v7x
topology: tpu7x:2x2x1
jax: 0.10.0
libtpu: 0.0.40
codegen_flags: <defaults>
</compile_context>

<pallas_src>
import jax
import jax.numpy as jnp
from jax.experimental import pallas as pl
from jax.experimental.pallas import tpu as pltpu

N_PAD = 128   # lane-dense padded logit width used inside the kernel (MXU cols)
N_OUT = 2     # real number of NSP logits written back to HBM


def _nsp_kernel(x_ref, w_ref, b_ref, o_ref):
    # x_ref: (TB, H)   streamed X tile
    # w_ref: (H, 128)  resident lane-padded weight (columns >= 2 are zero)
    # b_ref: (1, 2)    f32 bias
    # o_ref: (TB, 2)   narrow output tile (masked vst; vst slot has slack)
    acc = jnp.dot(x_ref[...], w_ref[...], preferred_element_type=jnp.float32)
    o_ref[...] = (acc[:, :N_OUT] + b_ref[...]).astype(o_ref.dtype)


def next_sentence_pred(x, weight, bias, *, tb=2048):
    """x: (..., H); weight: (2, H); bias: (2,) -> (..., 2)."""
    lead_shape = x.shape[:-1]
    H = x.shape[-1]
    if x.ndim != 2:
        x = x.reshape(-1, H)
    B = x.shape[0]
    assert weight.shape == (N_OUT, H) and bias.shape == (N_OUT,)

    # One-time tiny transform of the (2, H) weight into a lane-dense (H, 128)
    # tile (only the first 2 columns are non-zero, so the real logits are exact).
    w_pad = (
        jnp.zeros((H, N_PAD), dtype=x.dtype).at[:, :N_OUT].set(weight.T.astype(x.dtype))
    )
    b2d = bias.reshape(1, N_OUT).astype(jnp.float32)

    # Batch tile: multiple of the sublane packing (8 f32 / 16 bf16), no larger
    # than ~B/2 (rounded up) so the "parallel" grid keeps both v7x TCs busy.
    sub = 16 if x.dtype == jnp.bfloat16 else 8
    tb = max(sub, (int(tb) // sub) * sub)
    cap = max(sub, ((pl.cdiv(B, 2) + sub - 1) // sub) * sub)
    tb = min(tb, cap)
    grid = pl.cdiv(B, tb)  # ragged last tile is clipped/masked by Pallas

    # Scoped-VMEM budget: double-buffered X + W + narrow output, with headroom.
    need = (
        2 * tb * H * x.dtype.itemsize
        + 2 * H * N_PAD * w_pad.dtype.itemsize
        + 2 * tb * N_OUT * 4
        + (2 << 20)
    )
    vmem_limit = int(min(max(32 << 20, need), 56 << 20))  # safe on v5e/v6e/v7x

    out = pl.pallas_call(
        _nsp_kernel,
        out_shape=jax.ShapeDtypeStruct((B, N_OUT), x.dtype),
        grid_spec=pltpu.PrefetchScalarGridSpec(
            num_scalar_prefetch=0,
            grid=(grid,),
            in_specs=[
                pl.BlockSpec((tb, H), lambda i: (i, 0)),       # streamed X tiles
                pl.BlockSpec((H, N_PAD), lambda i: (0, 0)),    # resident padded W
                pl.BlockSpec((1, N_OUT), lambda i: (0, 0)),    # f32 bias
            ],
            out_specs=pl.BlockSpec((tb, N_OUT), lambda i: (i, 0)),
        ),
        compiler_params=pltpu.CompilerParams(
            dimension_semantics=("parallel",),  # independent batch tiles
            vmem_limit_bytes=vmem_limit,
        ),
    )(x, w_pad, b2d)

    return out.reshape(lead_shape + (N_OUT,))


if __name__ == "__main__":
    key = jax.random.PRNGKey(0)
    kx, kw, kb, kx2 = jax.random.split(key, 4)

    # Small shapes consistent with the module (LazyLinear(2) on (B, H) inputs).
    batch, hidden = 8, 32
    x = jax.random.normal(kx, (batch, hidden), dtype=jnp.float32)
    weight = jax.random.normal(kw, (2, hidden), dtype=jnp.float32) * 0.02
    bias = jax.random.normal(kb, (2,), dtype=jnp.float32) * 0.02

    out = jax.block_until_ready(next_sentence_pred(x, weight, bias))
    ref = x @ weight.T + bias
    assert out.shape == (batch, 2)
    assert jnp.allclose(out, ref, atol=1e-5, rtol=1e-5)

    # Second check: multi-tile grid with a ragged last tile (no wrapper padding).
    b2, h2 = 200, 128
    x2 = jax.random.normal(kx2, (b2, h2), dtype=jnp.float32)
    w2 = jax.random.normal(kw, (2, h2), dtype=jnp.float32) * 0.02
    out2 = jax.block_until_ready(next_sentence_pred(x2, w2, bias, tb=64))
    ref2 = x2 @ w2.T + bias
    assert out2.shape == (b2, 2)
    assert jnp.allclose(out2, ref2, atol=1e-4, rtol=1e-4)

    print("KERNEL_OK")
</pallas_src>

<mosaic_0001>
module attributes {stable_mosaic.version = 11 : i64} {
  func.func @_nsp_kernel(%arg0: i32, %arg1: memref<8x32xf32, #tpu.memory_space<vmem>>, %arg2: memref<32x128xf32, #tpu.memory_space<vmem>>, %arg3: memref<1x2xf32, #tpu.memory_space<vmem>>, %arg4: memref<8x2xf32, #tpu.memory_space<vmem>>) attributes {dimension_semantics = [#tpu.dimension_semantics<parallel>], iteration_bounds = array<i64: 1>, scalar_prefetch = 0 : i64, scratch_operands = 0 : i64, tpu.core_type = #tpu.core_type<tc>, window_params = [{transform_indices = @transform_0, window_bounds = array<i64: 8, 32>}, {pipeline_mode = #tpu.pipeline_mode<synchronous>, transform_indices = @transform_1, window_bounds = array<i64: 32, 128>}, {pipeline_mode = #tpu.pipeline_mode<synchronous>, transform_indices = @transform_2, window_bounds = array<i64: 1, 2>}, {transform_indices = @transform_3, window_bounds = array<i64: 8, 2>}]} {
    %c0 = arith.constant 0 : index
    %c0_0 = arith.constant 0 : index
    %0 = vector.load %arg1[%c0, %c0_0] : memref<8x32xf32, #tpu.memory_space<vmem>>, vector<8x32xf32>
    %c0_1 = arith.constant 0 : index
    %c0_2 = arith.constant 0 : index
    %1 = vector.load %arg2[%c0_1, %c0_2] : memref<32x128xf32, #tpu.memory_space<vmem>>, vector<32x128xf32>
    %cst = arith.constant dense<0.000000e+00> : vector<8x128xf32>
    %2 = tpu.matmul %0, %1, %cst {dimension_numbers = #tpu.dot_dimension_numbers<[1], [0], [0], [1], [0, 0, 1, 1], [], []>} : vector<8x32xf32>, vector<32x128xf32>, vector<8x128xf32> -> vector<8x128xf32>
    %3 = vector.extract_strided_slice %2 {offsets = [0, 0], sizes = [8, 2], strides = [1, 1]} : vector<8x128xf32> to vector<8x2xf32>
    %c0_3 = arith.constant 0 : index
    %c0_4 = arith.constant 0 : index
    %4 = vector.load %arg3[%c0_3, %c0_4] : memref<1x2xf32, #tpu.memory_space<vmem>>, vector<1x2xf32>
    %5 = vector.broadcast %4 : vector<1x2xf32> to vector<8x2xf32>
    %6 = arith.addf %3, %5 : vector<8x2xf32>
    %c0_5 = arith.constant 0 : index
    %c0_6 = arith.constant 0 : index
    %7 = vector.load %arg4[%c0_5, %c0_6] : memref<8x2xf32, #tpu.memory_space<vmem>>, vector<8x2xf32>
    tpu.vector_store %arg4[%c0_5, %c0_6], %6 {strides = array<i32>} : memref<8x2xf32, #tpu.memory_space<vmem>>, vector<8x2xf32>,
    return
  }
  func.func @transform_0(%arg0: i32) -> (i32, i32) {
    %c0_i32 = arith.constant 0 : i32
    %c0_i32_0 = arith.constant 0 : i32
    return %arg0, %c0_i32 : i32, i32
  }
  func.func @transform_1(%arg0: i32) -> (i32, i32) {
    %c0_i32 = arith.constant 0 : i32
    %c0_i32_0 = arith.constant 0 : i32
    %c0_i32_1 = arith.constant 0 : i32
    return %c0_i32, %c0_i32_0 : i32, i32
  }
  func.func @transform_2(%arg0: i32) -> (i32, i32) {
    %c0_i32 = arith.constant 0 : i32
    %c0_i32_0 = arith.constant 0 : i32
    %c0_i32_1 = arith.constant 0 : i32
    return %c0_i32, %c0_i32_0 : i32, i32
  }
  func.func @transform_3(%arg0: i32) -> (i32, i32) {
    %c0_i32 = arith.constant 0 : i32
    %c0_i32_0 = arith.constant 0 : i32
    return %arg0, %c0_i32 : i32, i32
  }
}

</mosaic_0001>

<llo_original>
// kernel: tpu_custom_call.1
$region0: #{tpu_custom_call.1}
  #allocation0 [shape = 'u32[]', space=smem, size = 0x4, offset = 0x4, fixed_abs, tag = 'smem constant byte address 0x4 - core index']
  #allocation1 [shape = 'u32[144,128]{1,0:T(1,128)}', space=vmem, size = 0x12000, scoped, tag = 'internal scratch']
  %s0 = inlined_call_operand.hbm [shape: f32[8,32], index: 0, kind: input, shape index: {}]
  %s1 = inlined_call_operand.hbm [shape: f32[32,128], index: 1, kind: input, shape index: {}]
  %s2 = inlined_call_operand.vmem [shape: f32[1,2], index: 2, kind: input, shape index: {}]
  %s3 = inlined_call_operand.vmem [shape: f32[8,2], index: 3, kind: output, shape index: {}]
  %s4 = sld [smem:[#allocation0]]
  $region30: #{tpu_custom_call.1} parent=0
    _
  %s6 = ssub.s32 1, %s4
  %s7 = scalar_select 0, %s6, %s4
  $region1: #{tpu_custom_call.1} parent=0
    #allocation2 [shape = 'u8[4096]{0}', space=vmem, size = 0x1000, scoped, tag = 'input window, operand 0, single buffered']
    #allocation3 [shape = 's32[1]{0}', space=sflag, size = 0x4, scoped, tag = 'scoped memory for tpu_custom_call.1']
    #allocation4 [shape = 'u8[16384]{0}', space=vmem, size = 0x4000, scoped, tag = 'input window, operand 1, single buffered']
    #allocation5 [shape = 's32[1]{0}', space=sflag, size = 0x4, scoped, tag = 'scoped memory for tpu_custom_call.1']
    %8 = vsyncpa [#allocation3], 0
    %9 = vsyncpa [#allocation5], 0
    // Predicated region
    $region2: #{tpu_custom_call.1} parent=1 // pred_check
      _
    $region3: #{tpu_custom_call.1} parent=1 // pred_check_branch
      %11 = sbr.rel (0) target = $region5
    $region4: #{tpu_custom_call.1} parent=1 // pred_region
      %s13 = ssub.s32 128, 128
      %14 = vsyncadd [#allocation3], %s13
      %s16 = sshll.u32 [#allocation2], 4
      %s17 = int_to_ptr.vmem [resolvable:$true] %s16
      %19 = dma.hbm_to_vmem [thread:$0]  %s0, 128, %s17, [#allocation3]
    $region5: #{tpu_custom_call.1} parent=1 // pred_fallthru
      _
    // Predicated region
    $region6: #{tpu_custom_call.1} parent=1 // pred_check
      _
    $region7: #{tpu_custom_call.1} parent=1 // pred_check_branch
      %21 = sbr.rel (0) target = $region9
    $region8: #{tpu_custom_call.1} parent=1 // pred_region
      %s23 = ssub.s32 512, 512
      %24 = vsyncadd [#allocation5], %s23
      %s25 = sshll.u32 [#allocation4], 4
      %s26 = int_to_ptr.vmem [resolvable:$true] %s25
      %31 = dma.hbm_to_vmem [thread:$0]  %s1, 512, %s26, [#allocation5], 128, 128, 8
    $region9: #{tpu_custom_call.1} parent=1 // pred_fallthru
      _
    // Predicated region
    $region10: #{tpu_custom_call.1} parent=1 // pred_check
      _
    $region11: #{tpu_custom_call.1} parent=1 // pred_check_branch
      %33 = sbr.rel (0) target = $region13
    $region12: #{tpu_custom_call.1} parent=1 // pred_region
      _
    $region13: #{tpu_custom_call.1} parent=1 // pred_fallthru
      _
    // Predicated region
    $region14: #{tpu_custom_call.1} parent=1 // pred_check
      _
    $region15: #{tpu_custom_call.1} parent=1 // pred_check_branch
      %35 = sbr.rel (0) target = $region17
    $region16: #{tpu_custom_call.1} parent=1 // pred_region
      %36 = dma.done [#allocation3], 128
    $region17: #{tpu_custom_call.1} parent=1 // pred_fallthru
      _
    // Predicated region
    $region18: #{tpu_custom_call.1} parent=1 // pred_check
      _
    $region19: #{tpu_custom_call.1} parent=1 // pred_check_branch
      %38 = sbr.rel (0) target = $region21
    $region20: #{tpu_custom_call.1} parent=1 // pred_region
      %39 = dma.done [#allocation5], 512
    $region21: #{tpu_custom_call.1} parent=1 // pred_fallthru
      _
    %v40 = vld [vmem:[#allocation2] sm:$0xff]
    %v41 = vld [vmem:[#allocation4] sm:$0xff]
    %v42 = vld [vmem:[#allocation4 + $0x8] sm:$0xff]
    %v43 = vld [vmem:[#allocation4 + $0x10] sm:$0xff]
    %v44 = vld [vmem:[#allocation4 + $0x18] sm:$0xff]
    %vm45 = vcmask 261120
    %v47 = vsel %vm45, %v40, 0
    %49 = vmatprep.subr.mxu0 0.0
    %50 = vmatpush1.msra.mxu0 %v41
    %51 = vmatprep.subr.mxu0 0.0
    %52 = vmatpush1.msra.mxu0 %v42
    %53 = vmatprep.subr.mxu0 0.0
    %54 = vmatpush1.msra.mxu0 %v43
    %55 = vmatprep.subr.mxu0 0.0
    %56 = vmatpush1.msra.mxu0 %v44
    %57 = vmatprep.subr.mxu0 0.0
    %58 = vmatpush1.msra.mxu0 0.0
    %59 = vmatprep.subr.mxu0 0.0
    %60 = vmatpush1.msra.mxu0 0.0
    %61 = vmatprep.subr.mxu0 0.0
    %62 = vmatpush1.msra.mxu0 0.0
    %63 = vmatprep.subr.mxu0 0.0
    %64 = vmatpush1.msra.mxu0 0.0
    %65 = vmatprep.subr.mxu0 0.0
    %66 = vmatpush1.msra.mxu0 0.0
    %67 = vmatprep.subr.mxu0 0.0
    %68 = vmatpush1.msra.mxu0 0.0
    %69 = vmatprep.subr.mxu0 0.0
    %70 = vmatpush1.msra.mxu0 0.0
    %71 = vmatprep.subr.mxu0 0.0
    %72 = vmatpush1.msra.mxu0 0.0
    %73 = vmatprep.subr.mxu0 0.0
    %74 = vmatpush1.msra.mxu0 0.0
    %75 = vmatprep.subr.mxu0 0.0
    %76 = vmatpush1.msra.mxu0 0.0
    %77 = vmatprep.subr.mxu0 0.0
    %78 = vmatpush1.msra.mxu0 0.0
    %79 = vmatprep.subr.mxu0 0.0
    %80 = vmatpush1.msra.mxu0 0.0
    %81 = vmatprep.subr.mxu0 0.0
    %82 = vmatpush1.msra.mxu0 0.0
    %83 = vmatprep.subr.mxu0 0.0
    %84 = vmatpush1.msra.mxu0 0.0
    %85 = vmatprep.subr.mxu0 0.0
    %86 = vmatpush1.msra.mxu0 0.0
    %87 = vmatprep.subr.mxu0 0.0
    %88 = vmatpush1.msra.mxu0 0.0
    %89 = vmatprep.subr.mxu0 0.0
    %90 = vmatpush1.msra.mxu0 0.0
    %91 = vmatprep.subr.mxu0 0.0
    %92 = vmatpush1.msra.mxu0 0.0
    %93 = vmatprep.subr.mxu0 0.0
    %94 = vmatpush1.msra.mxu0 0.0
    %95 = vmatprep.subr.mxu0 0.0
    %96 = vmatpush1.msra.mxu0 0.0
    %97 = vmatprep.subr.mxu0 0.0
    %98 = vmatpush1.msra.mxu0 0.0
    %99 = vmatprep.subr.mxu0 0.0
    %100 = vmatpush1.msra.mxu0 0.0
    %101 = vmatprep.subr.mxu0 0.0
    %102 = vmatpush1.msra.mxu0 0.0
    %103 = vmatprep.subr.mxu0 0.0
    %104 = vmatpush1.msra.mxu0 0.0
    %105 = vmatprep.subr.mxu0 0.0
    %106 = vmatpush1.msra.mxu0 0.0
    %107 = vmatprep.subr.mxu0 0.0
    %108 = vmatpush1.msra.mxu0 0.0
    %109 = vmatprep.subr.mxu0 0.0
    %110 = vmatpush1.msra.mxu0 0.0
    %111 = vmatprep.subr.mxu0 0.0
    %112 = vmatpush1.msra.mxu0 0.0
    %113 = vmatprep.mubr.f32.mxu0 0.0
    %114 = vmatmul.mubr.f32.gmra.mrb[0].mxu0 %v47
    %v115 = vpop.f32.mrb[0].mxu0
    %v116 = vadd.f32 0.0, %v115
    %v117 = vpop.f32.mrb[0].mxu0
    %118 = vdwg.mxu0
    %v119 = vld [vmem:[%s2] sm:$0x1]
    %v121 = vlaneseq
    %v122 = vshrl.u32 %v121, 7
    %v123 = vsub.s32 0, %v122
    %v124 = vrot.slane %v119, %v123
    %v126 = vadd.f32 %v116, %v124
    %vm127 = vcmask 15360
    %128 = vst.msk [vmem:[%s3] sm:$0xff] %vm127, %v126
    // Predicated region
    $region22: #{tpu_custom_call.1} parent=1 // pred_check
      _
    $region23: #{tpu_custom_call.1} parent=1 // pred_check_branch
      %130 = sbr.rel (0) target = $region25
    $region24: #{tpu_custom_call.1} parent=1 // pred_region
      _
    $region25: #{tpu_custom_call.1} parent=1 // pred_fallthru
      _
    // Predicated region
    $region26: #{tpu_custom_call.1} parent=1 // pred_check
      _
    $region27: #{tpu_custom_call.1} parent=1 // pred_check_branch
      %132 = sbr.rel (0) target = $region29
    $region28: #{tpu_custom_call.1} parent=1 // pred_region
      _
    $region29: #{tpu_custom_call.1} parent=1 // pred_fallthru
      _
    %133 = vsyncpa [#allocation3], 1
    %134 = vsyncpa [#allocation5], 1

</llo_original>
